<compile_context>
chip_gen: v7x
topology: tpu7x:2x2x1
jax: 0.10.0
libtpu: 0.0.40
codegen_flags: <defaults>
</compile_context>

<pallas_src>
import jax
import jax.numpy as jnp
from jax.experimental import pallas as pl
from jax.experimental.pallas import tpu as pltpu


# -----------------------------------------------------------------------------
# Helpers
# -----------------------------------------------------------------------------
def _round_up(v, m):
    return ((v + m - 1) // m) * m


def _vmem_capacity_bytes():
    """Physical VMEM per TensorCore; conservative fallback = v7x (64 MiB)."""
    try:
        info = pltpu.get_tpu_info()
        cap = getattr(info, "vmem_capacity_bytes", None)
        if cap:
            return int(cap)
    except Exception:
        pass
    return 64 << 20


def _mosaic_params(semantics, block_bytes, vmem_bytes):
    # 4x covers double-buffering of every block + compiler temporaries; clamp
    # to 3/4 of the physical per-core VMEM of the generation we run on.
    limit = int(min(max(4 * int(block_bytes) + (4 << 20), 16 << 20),
                    (3 * vmem_bytes) // 4))
    return pltpu.CompilerParams(dimension_semantics=semantics,
                                vmem_limit_bytes=limit)


# -----------------------------------------------------------------------------
# Kernels
# -----------------------------------------------------------------------------
def _tconv_stats_kernel(x_ref, w_ref, sums_ref, acc_sum, acc_sq):
    """Pass 1: per-(tap, channel) column sums / sums of squares for one chunk.

    x_ref:    (1, Tp, Cin)      bf16 input positions for one spatial tile
    w_ref:    (Cin, 4*Cout)     bf16 packed weights, column = (dy*2+dx)*Cout+c
    sums_ref: (1, 1, 2, 4*Cout) f32 partial output for this chunk
    acc_*:    (1, 4*Cout)       f32 VMEM scratch, persistent across tile axis
    """
    t = pl.program_id(2)

    @pl.when(t == 0)
    def _():
        acc_sum[...] = jnp.zeros_like(acc_sum)
        acc_sq[...] = jnp.zeros_like(acc_sq)

    # Single MXU matmul: K = Cin, N = 4*Cout, f32 accumulation.
    y = jnp.dot(x_ref[0], w_ref[...], preferred_element_type=jnp.float32)
    acc_sum[...] += jnp.sum(y, axis=0, keepdims=True)
    acc_sq[...] += jnp.sum(y * y, axis=0, keepdims=True)

    @pl.when(t == pl.num_programs(2) - 1)
    def _():
        sums_ref[0, 0, 0:1, :] = acc_sum[...]
        sums_ref[0, 0, 1:2, :] = acc_sq[...]


def _tconv_apply_kernel(x_ref, w_ref, stats_ref, o_ref):
    """Pass 2: recompute matmul, InstanceNorm with precomputed stats, LeakyReLU.

    x_ref:     (1, Tp, Cin)    bf16
    w_ref:     (Cin, 4*Cout)   bf16
    stats_ref: (1, 2, 4*Cout)  f32, row 0 = mean, row 1 = inv_std
    o_ref:     (1, Tp, 4*Cout) bf16, lane-dense (4*Cout is a multiple of 128)
    """
    y = jnp.dot(x_ref[0], w_ref[...], preferred_element_type=jnp.float32)
    mean = stats_ref[0, 0:1, :]
    inv_std = stats_ref[0, 1:2, :]
    y = (y - mean) * inv_std
    o_ref[0] = jnp.maximum(y, 0.2 * y).astype(o_ref.dtype)


# -----------------------------------------------------------------------------
# Wrapper
# -----------------------------------------------------------------------------
def transpose_conv_block(x, weight, *, tile_positions=None, eps=1e-5,
                         store_dtype=jnp.bfloat16, out_dtype=None):
    """x: (N, Cin, H, W); weight: (Cin, Cout, 2, 2) (PyTorch layout).

    Returns (N, Cout, 2H, 2W) in `out_dtype` (default: x.dtype), matching
    TransposeConvBlock.forward.
    """
    n, cin, h, w = x.shape
    cout = weight.shape[1]
    p = h * w
    out_dtype = x.dtype if out_dtype is None else out_dtype

    # Pad Cout so the packed lane dimension 4*cout_pad is a multiple of 128.
    cout_pad = max(_round_up(cout, 32), 32)
    c4 = 4 * cout_pad
    store_itemsize = jnp.dtype(store_dtype).itemsize
    vmem_bytes = _vmem_capacity_bytes()

    # ---- Spatial tiling (cdiv + padded remainder, never a whole-image block)
    if tile_positions is None:
        per_pos = 2 * cin + store_itemsize * c4          # x + out bytes / position
        cap = (vmem_bytes // 4) // (2 * per_pos)         # 2x for double-buffering
        cap = int(max(256, min(cap, 4096)))              # 4096 ok on v6e, safe on v7x
    else:
        cap = max(16, int(tile_positions))
    nt = -(-p // cap)                                    # number of spatial tiles
    tp = _round_up(-(-p // nt), 16)                      # 16-multiple (bf16 sublanes)
    p_pad = nt * tp

    # ---- Layout glue (TODO(synk): fuse into producer in a full NHWC model) --
    xf = jnp.transpose(x, (0, 2, 3, 1)).reshape(n, p, cin).astype(jnp.bfloat16)
    if p_pad > p:
        xf = jnp.pad(xf, ((0, 0), (0, p_pad - p), (0, 0)))

    # Weight (Cin, Cout, dy, dx) -> (Cin, 4*cout_pad), col = (dy*2+dx)*cout_pad+c
    wp = jnp.transpose(weight, (0, 2, 3, 1))             # (Cin, 2, 2, Cout)
    if cout_pad > cout:
        wp = jnp.pad(wp, ((0, 0), (0, 0), (0, 0), (0, cout_pad - cout)))
    wp = wp.reshape(cin, c4).astype(jnp.bfloat16)

    # Chunk the tile axis so both v7x TensorCores work in pass 1 even for N=1.
    nchunks = 2 if (nt >= 2 and nt % 2 == 0) else 1
    tpc = nt // nchunks

    bs_x = tp * cin * 2
    bs_w = cin * c4 * 2
    bs_stats = 2 * c4 * 4

    # ---- Pass 1: per-column sum / sumsq (partial per chunk) -----------------
    colstats = pl.pallas_call(
        _tconv_stats_kernel,
        out_shape=jax.ShapeDtypeStruct((n, nchunks, 2, c4), jnp.float32),
        grid=(n, nchunks, tpc),
        in_specs=[pl.BlockSpec((1, tp, cin), lambda i, c, t: (i, c * tpc + t, 0)),
                  pl.BlockSpec((cin, c4), lambda i, c, t: (0, 0))],
        out_specs=pl.BlockSpec((1, 1, 2, c4), lambda i, c, t: (i, c, 0, 0)),
        scratch_shapes=[pltpu.VMEM((1, c4), jnp.float32),
                        pltpu.VMEM((1, c4), jnp.float32)],
        compiler_params=_mosaic_params(("parallel", "parallel", "arbitrary"),
                                       bs_x + bs_w + 2 * bs_stats, vmem_bytes),
    )(xf, wp)

    # Tiny JAX reduction: chunks -> image stats.  Padded rows/channels are zero
    # in both accumulators, so dividing by the real count 4*P stays exact.
    colstats = colstats.sum(axis=1)                       # (N, 2, 4*cout_pad)
    col_sum = colstats[:, 0, :].reshape(n, 4, cout_pad)
    col_sq = colstats[:, 1, :].reshape(n, 4, cout_pad)
    count = 4.0 * p
    mean = col_sum.sum(axis=1) / count                    # (N, cout_pad)
    var = col_sq.sum(axis=1) / count - mean * mean
    var = jnp.maximum(var, 0.0)                           # clamp >= 0
    inv_std = jax.lax.rsqrt(var + eps)
    stats = jnp.stack([jnp.tile(mean, (1, 4)),
                       jnp.tile(inv_std, (1, 4))], axis=1)  # (N, 2, 4*cout_pad)

    # ---- Pass 2: normalize + LeakyReLU, lane-dense bf16 stores --------------
    bs_o = tp * c4 * store_itemsize
    yflat = pl.pallas_call(
        _tconv_apply_kernel,
        out_shape=jax.ShapeDtypeStruct((n, p_pad, c4), store_dtype),
        grid=(n, nt),
        in_specs=[pl.BlockSpec((1, tp, cin), lambda i, j: (i, j, 0)),
                  pl.BlockSpec((cin, c4), lambda i, j: (0, 0)),
                  pl.BlockSpec((1, 2, c4), lambda i, j: (i, 0, 0))],
        out_specs=pl.BlockSpec((1, tp, c4), lambda i, j: (i, j, 0)),
        compiler_params=_mosaic_params(("parallel", "parallel"),
                                       bs_x + bs_w + bs_stats + bs_o, vmem_bytes),
    )(xf, wp, stats)

    # Depth-to-space + NHWC->NCHW + dtype cast in one fused XLA pass (reads the
    # half-width bf16 slab once, writes the final dtype once).
    y = yflat[:, :p, :].reshape(n, h, w, 2, 2, cout_pad)[..., :cout]
    y = jnp.transpose(y, (0, 5, 1, 3, 2, 4)).reshape(n, cout, 2 * h, 2 * w)
    return y.astype(out_dtype)


# -----------------------------------------------------------------------------
# Pure-JAX reference (independent compute path) for correctness check
# -----------------------------------------------------------------------------
def transpose_conv_block_ref(x, weight, eps=1e-5, negative_slope=0.2):
    n, cin, h, w = x.shape
    cout = weight.shape[1]
    y = jnp.einsum('nchw,coyx->nohywx', x, weight)        # (N, Cout, H, 2, W, 2)
    y = y.reshape(n, cout, 2 * h, 2 * w)
    m = y.mean(axis=(2, 3), keepdims=True)
    v = jnp.mean((y - m) ** 2, axis=(2, 3), keepdims=True)  # biased variance
    y = (y - m) * jax.lax.rsqrt(v + eps)
    return jnp.where(y >= 0.0, y, negative_slope * y)


if __name__ == "__main__":
    key = jax.random.PRNGKey(0)
    kx, kw = jax.random.split(key)
    # Deliberately awkward small shapes: out_chans=24 exercises lane padding
    # (4*Cout -> 128), W=15 exercises the zero-padded remainder spatial tile,
    # and tile_positions=64 gives 4 tiles -> 2 stats chunks (dual-TC path).
    n, in_chans, out_chans, h, w = 2, 32, 24, 16, 15

    x = jax.random.normal(kx, (n, in_chans, h, w), jnp.float32)
    w_scale = (1.0 / (4.0 * in_chans)) ** 0.5
    weight = jax.random.normal(kw, (in_chans, out_chans, 2, 2),
                               jnp.float32) * w_scale

    fwd = jax.jit(lambda xx, ww: transpose_conv_block(xx, ww,
                                                      tile_positions=64))
    y = fwd(x, weight)
    jax.block_until_ready(y)

    assert y.shape == (n, out_chans, 2 * h, 2 * w), y.shape
    assert bool(jnp.all(jnp.isfinite(y)))

    y_ref = transpose_conv_block_ref(x, weight)
    max_err = float(jnp.max(jnp.abs(y - y_ref)))
    mean_err = float(jnp.mean(jnp.abs(y - y_ref)))
    # bf16 matmul inputs + bf16 output storage -> ~1e-2-scale absolute error.
    assert max_err < 1e-1, f"max abs err {max_err}"
    assert mean_err < 1e-2, f"mean abs err {mean_err}"

    print("KERNEL_OK")
</pallas_src>

<mosaic_0001>
module attributes {stable_mosaic.version = 11 : i64} {
  func.func @_tconv_stats_kernel(%arg0: i32, %arg1: i32, %arg2: i32, %arg3: memref<1x64x32xbf16, #tpu.memory_space<vmem>>, %arg4: memref<32x128xbf16, #tpu.memory_space<vmem>>, %arg5: memref<1x1x2x128xf32, #tpu.memory_space<vmem>>, %arg6: memref<1x128xf32, #tpu.memory_space<vmem>>, %arg7: memref<1x128xf32, #tpu.memory_space<vmem>>) attributes {dimension_semantics = [#tpu.dimension_semantics<parallel>, #tpu.dimension_semantics<parallel>, #tpu.dimension_semantics<arbitrary>], iteration_bounds = array<i64: 2, 2, 2>, scalar_prefetch = 0 : i64, scratch_operands = 2 : i64, tpu.core_type = #tpu.core_type<tc>, window_params = [{transform_indices = @transform_0, window_bounds = array<i64: 1, 64, 32>}, {pipeline_mode = #tpu.pipeline_mode<synchronous>, transform_indices = @transform_1, window_bounds = array<i64: 32, 128>}, {transform_indices = @transform_2, window_bounds = array<i64: 1, 1, 2, 128>}]} {
    %c0_i32 = arith.constant 0 : i32
    %0 = arith.cmpi eq, %arg2, %c0_i32 : i32
    %1 = arith.extui %0 : i1 to i32
    %c0_i32_0 = arith.constant 0 : i32
    %2 = arith.cmpi ne, %1, %c0_i32_0 : i32
    scf.if %2 {
      %cst_16 = arith.constant 0.000000e+00 : f32
      %21 = vector.broadcast %cst_16 : f32 to vector<1x128xf32>
      %c0_17 = arith.constant 0 : index
      %c0_18 = arith.constant 0 : index
      %22 = vector.load %arg6[%c0_17, %c0_18] : memref<1x128xf32, #tpu.memory_space<vmem>>, vector<1x128xf32>
      tpu.vector_store %arg6[%c0_17, %c0_18], %21 {strides = array<i32>} : memref<1x128xf32, #tpu.memory_space<vmem>>, vector<1x128xf32>,
      %cst_19 = arith.constant 0.000000e+00 : f32
      %23 = vector.broadcast %cst_19 : f32 to vector<1x128xf32>
      %c0_20 = arith.constant 0 : index
      %c0_21 = arith.constant 0 : index
      %24 = vector.load %arg7[%c0_20, %c0_21] : memref<1x128xf32, #tpu.memory_space<vmem>>, vector<1x128xf32>
      tpu.vector_store %arg7[%c0_20, %c0_21], %23 {strides = array<i32>} : memref<1x128xf32, #tpu.memory_space<vmem>>, vector<1x128xf32>,
    } else {
    }
    %c0 = arith.constant 0 : index
    %c0_1 = arith.constant 0 : index
    %c0_2 = arith.constant 0 : index
    %3 = vector.load %arg3[%c0, %c0_1, %c0_2] : memref<1x64x32xbf16, #tpu.memory_space<vmem>>, vector<1x64x32xbf16>
    %4 = vector.shape_cast %3 : vector<1x64x32xbf16> to vector<64x32xbf16>
    %c0_3 = arith.constant 0 : index
    %c0_4 = arith.constant 0 : index
    %5 = vector.load %arg4[%c0_3, %c0_4] : memref<32x128xbf16, #tpu.memory_space<vmem>>, vector<32x128xbf16>
    %cst = arith.constant dense<0.000000e+00> : vector<64x128xf32>
    %6 = tpu.matmul %4, %5, %cst {dimension_numbers = #tpu.dot_dimension_numbers<[1], [0], [0], [1], [0, 0, 1, 1], [], []>} : vector<64x32xbf16>, vector<32x128xbf16>, vector<64x128xf32> -> vector<64x128xf32>
    %c0_5 = arith.constant 0 : index
    %c0_6 = arith.constant 0 : index
    %7 = vector.load %arg6[%c0_5, %c0_6] : memref<1x128xf32, #tpu.memory_space<vmem>>, vector<1x128xf32>
    %cst_7 = arith.constant dense<0.000000e+00> : vector<128xf32>
    %8 = vector.multi_reduction <add>, %6, %cst_7 [0] : vector<64x128xf32> to vector<128xf32>
    %9 = vector.shape_cast %8 : vector<128xf32> to vector<1x128xf32>
    %10 = arith.addf %7, %9 : vector<1x128xf32>
    %c0_8 = arith.constant 0 : index
    %c0_9 = arith.constant 0 : index
    %11 = vector.load %arg6[%c0_8, %c0_9] : memref<1x128xf32, #tpu.memory_space<vmem>>, vector<1x128xf32>
    tpu.vector_store %arg6[%c0_8, %c0_9], %10 {strides = array<i32>} : memref<1x128xf32, #tpu.memory_space<vmem>>, vector<1x128xf32>,
    %c0_10 = arith.constant 0 : index
    %c0_11 = arith.constant 0 : index
    %12 = vector.load %arg7[%c0_10, %c0_11] : memref<1x128xf32, #tpu.memory_space<vmem>>, vector<1x128xf32>
    %13 = arith.mulf %6, %6 : vector<64x128xf32>
    %cst_12 = arith.constant dense<0.000000e+00> : vector<128xf32>
    %14 = vector.multi_reduction <add>, %13, %cst_12 [0] : vector<64x128xf32> to vector<128xf32>
    %15 = vector.shape_cast %14 : vector<128xf32> to vector<1x128xf32>
    %16 = arith.addf %12, %15 : vector<1x128xf32>
    %c0_13 = arith.constant 0 : index
    %c0_14 = arith.constant 0 : index
    %17 = vector.load %arg7[%c0_13, %c0_14] : memref<1x128xf32, #tpu.memory_space<vmem>>, vector<1x128xf32>
    tpu.vector_store %arg7[%c0_13, %c0_14], %16 {strides = array<i32>} : memref<1x128xf32, #tpu.memory_space<vmem>>, vector<1x128xf32>,
    %c1_i32 = arith.constant 1 : i32
    %18 = arith.cmpi eq, %arg2, %c1_i32 : i32
    %19 = arith.extui %18 : i1 to i32
    %c0_i32_15 = arith.constant 0 : i32
    %20 = arith.cmpi ne, %19, %c0_i32_15 : i32
    scf.if %20 {
      %c0_16 = arith.constant 0 : index
      %c0_17 = arith.constant 0 : index
      %21 = vector.load %arg6[%c0_16, %c0_17] : memref<1x128xf32, #tpu.memory_space<vmem>>, vector<1x128xf32>
      %c0_18 = arith.constant 0 : index
      %c0_19 = arith.constant 0 : index
      %c0_20 = arith.constant 0 : index
      %c0_21 = arith.constant 0 : index
      %22 = vector.load %arg5[%c0_18, %c0_19, %c0_20, %c0_21] : memref<1x1x2x128xf32, #tpu.memory_space<vmem>>, vector<1x1x1x128xf32>
      %23 = vector.shape_cast %22 : vector<1x1x1x128xf32> to vector<1x128xf32>
      %24 = vector.shape_cast %21 : vector<1x128xf32> to vector<1x1x1x128xf32>
      tpu.vector_store %arg5[%c0_18, %c0_19, %c0_20, %c0_21], %24 {strides = array<i32>} : memref<1x1x2x128xf32, #tpu.memory_space<vmem>>, vector<1x1x1x128xf32>,
      %c0_22 = arith.constant 0 : index
      %c0_23 = arith.constant 0 : index
      %25 = vector.load %arg7[%c0_22, %c0_23] : memref<1x128xf32, #tpu.memory_space<vmem>>, vector<1x128xf32>
      %c0_24 = arith.constant 0 : index
      %c0_25 = arith.constant 0 : index
      %c1 = arith.constant 1 : index
      %c0_26 = arith.constant 0 : index
      %26 = vector.load %arg5[%c0_24, %c0_25, %c1, %c0_26] : memref<1x1x2x128xf32, #tpu.memory_space<vmem>>, vector<1x1x1x128xf32>
      %27 = vector.shape_cast %26 : vector<1x1x1x128xf32> to vector<1x128xf32>
      %28 = vector.shape_cast %25 : vector<1x128xf32> to vector<1x1x1x128xf32>
      tpu.vector_store %arg5[%c0_24, %c0_25, %c1, %c0_26], %28 {strides = array<i32>} : memref<1x1x2x128xf32, #tpu.memory_space<vmem>>, vector<1x1x1x128xf32>,
    } else {
    }
    return
  }
  func.func @transform_0(%arg0: i32, %arg1: i32, %arg2: i32) -> (i32, i32, i32) {
    %c2_i32 = arith.constant 2 : i32
    %0 = arith.muli %arg1, %c2_i32 : i32
    %1 = arith.addi %0, %arg2 : i32
    %c0_i32 = arith.constant 0 : i32
    %c0_i32_0 = arith.constant 0 : i32
    return %arg0, %1, %c0_i32 : i32, i32, i32
  }
  func.func @transform_1(%arg0: i32, %arg1: i32, %arg2: i32) -> (i32, i32) {
    %c0_i32 = arith.constant 0 : i32
    %c0_i32_0 = arith.constant 0 : i32
    %c0_i32_1 = arith.constant 0 : i32
    return %c0_i32, %c0_i32_0 : i32, i32
  }
  func.func @transform_2(%arg0: i32, %arg1: i32, %arg2: i32) -> (i32, i32, i32, i32) {
    %c0_i32 = arith.constant 0 : i32
    %c0_i32_0 = arith.constant 0 : i32
    %c0_i32_1 = arith.constant 0 : i32
    return %arg0, %arg1, %c0_i32, %c0_i32_0 : i32, i32, i32, i32
  }
}

module attributes {stable_mosaic.version = 11 : i64} {
  func.func @_tconv_apply_kernel(%arg0: i32, %arg1: i32, %arg2: memref<1x64x32xbf16, #tpu.memory_space<vmem>>, %arg3: memref<32x128xbf16, #tpu.memory_space<vmem>>, %arg4: memref<1x2x128xf32, #tpu.memory_space<vmem>>, %arg5: memref<1x64x128xbf16, #tpu.memory_space<vmem>>) attributes {dimension_semantics = [#tpu.dimension_semantics<parallel>, #tpu.dimension_semantics<parallel>], iteration_bounds = array<i64: 2, 4>, scalar_prefetch = 0 : i64, scratch_operands = 0 : i64, tpu.core_type = #tpu.core_type<tc>, window_params = [{transform_indices = @transform_0, window_bounds = array<i64: 1, 64, 32>}, {pipeline_mode = #tpu.pipeline_mode<synchronous>, transform_indices = @transform_1, window_bounds = array<i64: 32, 128>}, {transform_indices = @transform_2, window_bounds = array<i64: 1, 2, 128>}, {transform_indices = @transform_3, window_bounds = array<i64: 1, 64, 128>}]} {
    %c0 = arith.constant 0 : index
    %c0_0 = arith.constant 0 : index
    %c0_1 = arith.constant 0 : index
    %0 = vector.load %arg2[%c0, %c0_0, %c0_1] : memref<1x64x32xbf16, #tpu.memory_space<vmem>>, vector<1x64x32xbf16>
    %1 = vector.shape_cast %0 : vector<1x64x32xbf16> to vector<64x32xbf16>
    %c0_2 = arith.constant 0 : index
    %c0_3 = arith.constant 0 : index
    %2 = vector.load %arg3[%c0_2, %c0_3] : memref<32x128xbf16, #tpu.memory_space<vmem>>, vector<32x128xbf16>
    %cst = arith.constant dense<0.000000e+00> : vector<64x128xf32>
    %3 = tpu.matmul %1, %2, %cst {dimension_numbers = #tpu.dot_dimension_numbers<[1], [0], [0], [1], [0, 0, 1, 1], [], []>} : vector<64x32xbf16>, vector<32x128xbf16>, vector<64x128xf32> -> vector<64x128xf32>
    %c0_4 = arith.constant 0 : index
    %c0_5 = arith.constant 0 : index
    %c0_6 = arith.constant 0 : index
    %4 = vector.load %arg4[%c0_4, %c0_5, %c0_6] : memref<1x2x128xf32, #tpu.memory_space<vmem>>, vector<1x1x128xf32>
    %5 = vector.shape_cast %4 : vector<1x1x128xf32> to vector<1x128xf32>
    %c0_7 = arith.constant 0 : index
    %c1 = arith.constant 1 : index
    %c0_8 = arith.constant 0 : index
    %6 = vector.load %arg4[%c0_7, %c1, %c0_8] : memref<1x2x128xf32, #tpu.memory_space<vmem>>, vector<1x1x128xf32>
    %7 = vector.shape_cast %6 : vector<1x1x128xf32> to vector<1x128xf32>
    %8 = vector.broadcast %5 : vector<1x128xf32> to vector<64x128xf32>
    %9 = arith.subf %3, %8 : vector<64x128xf32>
    %10 = vector.broadcast %7 : vector<1x128xf32> to vector<64x128xf32>
    %11 = arith.mulf %9, %10 : vector<64x128xf32>
    %cst_9 = arith.constant 2.000000e-01 : f32
    %12 = vector.broadcast %cst_9 : f32 to vector<64x128xf32>
    %13 = arith.mulf %12, %11 : vector<64x128xf32>
    %14 = arith.maximumf %11, %13 : vector<64x128xf32>
    %15 = arith.truncf %14 : vector<64x128xf32> to vector<64x128xbf16>
    %c0_10 = arith.constant 0 : index
    %c0_11 = arith.constant 0 : index
    %c0_12 = arith.constant 0 : index
    %16 = vector.load %arg5[%c0_10, %c0_11, %c0_12] : memref<1x64x128xbf16, #tpu.memory_space<vmem>>, vector<1x64x128xbf16>
    %17 = vector.shape_cast %16 : vector<1x64x128xbf16> to vector<64x128xbf16>
    %18 = vector.shape_cast %15 : vector<64x128xbf16> to vector<1x64x128xbf16>
    tpu.vector_store %arg5[%c0_10, %c0_11, %c0_12], %18 {strides = array<i32>} : memref<1x64x128xbf16, #tpu.memory_space<vmem>>, vector<1x64x128xbf16>,
    return
  }
  func.func @transform_0(%arg0: i32, %arg1: i32) -> (i32, i32, i32) {
    %c0_i32 = arith.constant 0 : i32
    %c0_i32_0 = arith.constant 0 : i32
    return %arg0, %arg1, %c0_i32 : i32, i32, i32
  }
  func.func @transform_1(%arg0: i32, %arg1: i32) -> (i32, i32) {
    %c0_i32 = arith.constant 0 : i32
    %c0_i32_0 = arith.constant 0 : i32
    %c0_i32_1 = arith.constant 0 : i32
    return %c0_i32, %c0_i32_0 : i32, i32
  }
  func.func @transform_2(%arg0: i32, %arg1: i32) -> (i32, i32, i32) {
    %c0_i32 = arith.constant 0 : i32
    %c0_i32_0 = arith.constant 0 : i32
    %c0_i32_1 = arith.constant 0 : i32
    return %arg0, %c0_i32, %c0_i32_0 : i32, i32, i32
  }
  func.func @transform_3(%arg0: i32, %arg1: i32) -> (i32, i32, i32) {
    %c0_i32 = arith.constant 0 : i32
    %c0_i32_0 = arith.constant 0 : i32
    return %arg0, %arg1, %c0_i32 : i32, i32, i32
  }
}

</mosaic_0001>

<llo_original>
// kernel: squeeze.2
$region0: #{squeeze.2}
  %s0 = inlined_call_operand.vmem [shape: f32[2,128], index: 0, kind: input, shape index: {}]
  %s1 = inlined_call_operand.vmem [shape: f32[2,4,32], index: 1, kind: output, shape index: {}]
  $region1: #{squeeze.2} parent=0
    #allocation0 [shape = 'u8[8192]{0}', space=vmem, size = 0x2000, scoped, tag = 'scoped mem for output reshape']
    #allocation1 [shape = 'u8[4096]{0}', space=vmem, size = 0x1000, scoped, tag = 'scoped mem for input reshape']
    %s3 = sshllo.u32 0, 2
    %v4 = vld [vmem:[%s0] sm:%s3]
    %5 = vst [vmem:[#allocation1] sm:%s3] %v4
    %v6 = vld [vmem:[#allocation1] sm:$0x3]
    %vm7 = vcmask 261120
    %8 = vst.msk [vmem:[#allocation0] ss:$8 sm:$0x3] %vm7, %v6
    %v9 = vld [vmem:[#allocation1] sm:$0x3]
    %10 = vrot.lane.b32.xlu0 %v9, 96
    %v11 = vpop.permute.xlu0 %10
    %vm12 = vcmask 261120
    %s13 = scalar_lea.vmem [#allocation0], 1
    %14 = vst.msk [vmem:[%s13] ss:$8 sm:$0x3] %vm12, %v11
    %v15 = vld [vmem:[#allocation1] sm:$0x3]
    %16 = vrot.lane.b32.xlu0 %v15, 64
    %v17 = vpop.permute.xlu0 %16
    %vm18 = vcmask 261120
    %s19 = scalar_lea.vmem [#allocation0], 2
    %20 = vst.msk [vmem:[%s19] ss:$8 sm:$0x3] %vm18, %v17
    %v21 = vld [vmem:[#allocation1] sm:$0x3]
    %22 = vrot.lane.b32.xlu0 %v21, 32
    %v23 = vpop.permute.xlu0 %22
    %vm24 = vcmask 261120
    %s25 = scalar_lea.vmem [#allocation0], 3
    %26 = vst.msk [vmem:[%s25] ss:$8 sm:$0x3] %vm24, %v23
    %s28 = sshllo.u32 0, 4
    %v30 = vld [vmem:[#allocation0] sm:%s28]
    %s31 = sshllo.u32 0, 4
    %32 = vst [vmem:[%s1] sm:%s31] %v30
    %s33 = scalar_lea.vmem [#allocation0], 8
    %v34 = vld [vmem:[%s33] sm:%s28]
    %s35 = sshllo.u32 0, 4
    %s36 = scalar_lea.vmem %s1, 4
    %37 = vst [vmem:[%s36] sm:%s35] %v34

// kernel: _lambda_.2
$region0: #{_lambda_.2}
  #allocation0 [shape = 'u32[]', space=smem, size = 0x4, offset = 0x4, fixed_abs, tag = 'smem constant byte address 0x4 - core index']
  #allocation1 [shape = 'u32[144,128]{1,0:T(1,128)}', space=vmem, size = 0x12000, scoped, tag = 'internal scratch']
  #allocation2 [shape = 'f32[1,128]{1,0:T(1,128)}', space=vmem, size = 0x200, scoped, tag = 'scratch operand']
  #allocation3 [shape = 'f32[1,128]{1,0:T(1,128)}', space=vmem, size = 0x200, scoped, tag = 'scratch operand']
  %s0 = inlined_call_operand.vmem [shape: bf16[2,256,32], index: 0, kind: input, shape index: {}]
  %s1 = inlined_call_operand.vmem [shape: bf16[32,128], index: 1, kind: input, shape index: {}]
  %s2 = inlined_call_operand.vmem [shape: f32[2,2,2,128], index: 2, kind: output, shape index: {}]
  %s3 = sld [smem:[#allocation0]]
  $region49: #{_lambda_.2} parent=0
    _
  %s5 = ssub.s32 1, %s3
  %s6 = scalar_select 0, %s5, %s3
  loop: start=0, step=1, limit=10
  $region2: #{_lambda_.2} parent=0 // loop_pre_header
    _
  $region3: #{_lambda_.2} parent=0 // loop_header
    %s8 = sphi 0, %s12
    %p9 = scmp.ge.s32.totalorder %s8, 10
    %s15 = sphi 0, %s34
    %s16 = sphi 0, %s30
    %s17 = sphi 0, %s26
    %s18 = sphi 0, %s15
    %s19 = sphi 0, %s16
    %s20 = sphi 0, %s17
    %s21 = sphi 0, %s18
    %s22 = sphi 0, %s19
    %s23 = sphi 0, %s20
    %s43 = sphi 0, %s45
    %s46 = sphi 0, %s43
    %s47 = sphi 0, %s46
    %s63 = sphi 0, %s47
    %s67 = sphi 0, %s67
    %s69 = sphi 0, %s67
    %s70 = sphi 0, %s69
    %s84 = sphi 0, %s70
    %s92 = sphi 0, %s94
    %s95 = sphi 0, %s92
    %s96 = sphi 0, %s95
    %s112 = sphi 0, %s96
  $region4: #{_lambda_.2} parent=0 // loop_header_branch
    %11 = sbr.rel (%p9) target = $region8
  $region5: #{_lambda_.2} parent=0 // loop_body
    %s13 = ssub.s32 %s8, 1
    %s14 = ssub.s32 %s8, 2
    %s24 = sadd.s32 1, %s17
    %p25 = scmp.ge.s32.totalorder %s24, 2
    %s26 = scalar_select %p25, 0, %s24
    %s27 = sadd.s32 1, %s16
    %s28 = scalar_select %p25, %s27, %s16
    %p29 = scmp.ge.s32.totalorder %s28, 2
    %s30 = scalar_select %p29, 0, %s28
    %s31 = sadd.s32 1, %s15
    %s32 = scalar_select %p29, %s31, %s15
    %p33 = scmp.ge.s32.totalorder %s32, 2
    %s34 = scalar_select %p33, 0, %s32
    %s35 = smul.u32 %s16, 2
    %s36 = sadd.s32 %s35, %s17
    %s37 = smul.u32 %s30, 2
    %s38 = sadd.s32 %s37, %s26
    %s39 = ssub.s32 %s15, %s34
    %s40 = ssub.s32 %s36, %s38
    %s41 = sor.u32 %s39, %s40
    %p42 = scmp.eq.s32.totalorder %s41, 0
    %s44 = sadd.s32 %s43, 1
    %s45 = scalar_select %p42, %s43, %s44
    %p48 = pneg %p42
    %p49 = scmp.eq.s32.totalorder %s8, 7
    %p50 = por %p48, %p49
    %p51 = scmp.ne.s32.totalorder %s43, %s46
    %p52 = scmp.eq.s32.totalorder %s8, 0
    %p53 = por %p51, %p52
    %p54 = scmp.ne.s32.totalorder %s43, %s46
    %p55 = scmp.eq.s32.totalorder %s13, 7
    %p56 = por %p54, %p55
    %p57 = scmp.ne.s32.totalorder %s46, %s47
    %p58 = scmp.eq.s32.totalorder %s13, 0
    %p59 = por %p57, %p58
    %p60 = scmp.ne.s32.totalorder %s46, %s47
    %p61 = scmp.eq.s32.totalorder %s14, 7
    %p62 = por %p60, %p61
    %p64 = scmp.ne.s32.totalorder %s47, %s63
    %p65 = scmp.eq.s32.totalorder %s14, 0
    %p66 = por %p64, %p65
    %s68 = sadd.s32 %s67, 1
    %p71 = scmp.eq.s32.totalorder %s8, 7
    %p72 = scmp.ne.s32.totalorder %s67, %s69
    %p73 = scmp.eq.s32.totalorder %s8, 0
    %p74 = por %p72, %p73
    %p75 = scmp.ne.s32.totalorder %s67, %s69
    %p76 = scmp.eq.s32.totalorder %s13, 7
    %p77 = por %p75, %p76
    %p78 = scmp.ne.s32.totalorder %s69, %s70
    %p79 = scmp.eq.s32.totalorder %s13, 0
    %p80 = por %p78, %p79
    %p81 = scmp.ne.s32.totalorder %s69, %s70
    %p82 = scmp.eq.s32.totalorder %s14, 7
    %p83 = por %p81, %p82
    %p85 = scmp.ne.s32.totalorder %s70, %s84
    %p86 = scmp.eq.s32.totalorder %s14, 0
    %p87 = por %p85, %p86
    %s88 = ssub.s32 %s15, %s34
    %s89 = ssub.s32 %s16, %s30
    %s90 = sor.u32 %s88, %s89
    %p91 = scmp.eq.s32.totalorder %s90, 0
    %s93 = sadd.s32 %s92, 1
    %s94 = scalar_select %p91, %s92, %s93
    %p97 = pneg %p91
    %p98 = scmp.eq.s32.totalorder %s8, 7
    %p99 = por %p97, %p98
    %p100 = scmp.ne.s32.totalorder %s92, %s95
    %p101 = scmp.eq.s32.totalorder %s8, 0
    %p102 = por %p100, %p101
    %p103 = scmp.ne.s32.totalorder %s92, %s95
    %p104 = scmp.eq.s32.totalorder %s13, 7
    %p105 = por %p103, %p104
    %p106 = scmp.ne.s32.totalorder %s95, %s96
    %p107 = scmp.eq.s32.totalorder %s13, 0
    %p108 = por %p106, %p107
    %p109 = scmp.ne.s32.totalorder %s95, %s96
    %p110 = scmp.eq.s32.totalorder %s14, 7
    %p111 = por %p109, %p110
    %p113 = scmp.ne.s32.totalorder %s96, %s112
    %p114 = scmp.eq.s32.totalorder %s14, 0
    %p115 = por %p113, %p114
    %p116 = scmp.le.s32.totalorder 1, %s8
    %p117 = scmp.lt.s32.totalorder %s8, 9
    %p118 = pnand %p116, %p117
    %p119 = pneg %p118
    // Predicated region
    $region9: #{_lambda_.2} parent=5 // pred_check
      _
    $region10: #{_lambda_.2} parent=5 // pred_check_branch
      %121 = sbr.rel (%p118) target = $region12
    $region11: #{_lambda_.2} parent=5 // pred_region
      %s122 = ssub.s32 %s8, 1
      // Predicated region
      $region13: #{_lambda_.2} parent=11 // pred_check
        %p123 = pneg %p80
      $region14: #{_lambda_.2} parent=11 // pred_check_branch
        %125 = sbr.rel (%p123) target = $region16
      $region15: #{_lambda_.2} parent=11 // pred_region
        _
      $region16: #{_lambda_.2} parent=11 // pred_fallthru
        _
    $region12: #{_lambda_.2} parent=5 // pred_fallthru
      _
    %p126 = scmp.lt.s32.totalorder %s8, 8
    // Predicated region
    $region17: #{_lambda_.2} parent=5 // pred_check
      %p127 = pneg %p126
    $region18: #{_lambda_.2} parent=5 // pred_check_branch
      %129 = sbr.rel (%p127) target = $region20
    $region19: #{_lambda_.2} parent=5 // pred_region
      // Predicated region
      $region21: #{_lambda_.2} parent=19 // pred_check
        %p130 = pneg %p53
      $region22: #{_lambda_.2} parent=19 // pred_check_branch
        %132 = sbr.rel (%p130) target = $region24
      $region23: #{_lambda_.2} parent=19 // pred_region
        %s133 = smul.u32 %s16, 2
        %s134 = sadd.s32 %s133, %s17
        %s135 = smul.u32 8, %s134
        %p136 = scmp.lt.s32.totalorder %s15, 1
        %s137 = scalar_select %p136, %s15, 1
        %p138 = scmp.lt.s32.totalorder %s135, 31
        %s139 = scalar_select %p138, %s135, 31
        %s140 = smul.addr %s137, 32
        %s141 = sadd.s32 %s139, %s140
        %s142 = smul.addr %s141, 4
        %s143 = scalar_lea.vmem %s0, %s142
        %s144 = smul.u32 %s16, 2
        %s145 = sadd.s32 %s144, %s17
        %s146 = smul.u32 8, %s145
      $region24: #{_lambda_.2} parent=19 // pred_fallthru
        _
    $region20: #{_lambda_.2} parent=5 // pred_fallthru
      _
    %p147 = scmp.le.s32.totalorder 1, %s8
    %p148 = scmp.lt.s32.totalorder %s8, 9
    %p149 = pnand %p147, %p148
    %p150 = pneg %p149
    // Predicated region
    $region25: #{_lambda_.2} parent=5 // pred_check
      _
    $region26: #{_lambda_.2} parent=5 // pred_check_branch
      %152 = sbr.rel (%p149) target = $region28
    $region27: #{_lambda_.2} parent=5 // pred_region
      %s153 = ssub.s32 %s8, 1
      %s154 = smul.u32 %s19, 2
      %s155 = sadd.s32 %s154, %s20
      %s156 = smul.u32 8, %s155
      %p157 = scmp.lt.s32.totalorder %s18, 1
      %s158 = scalar_select %p157, %s18, 1
      %p159 = scmp.lt.s32.totalorder %s156, 31
      %s160 = scalar_select %p159, %s156, 31
      %s161 = smul.addr %s158, 32
      %s162 = sadd.s32 %s160, %s161
      %s163 = smul.addr %s162, 4
      %s164 = scalar_lea.vmem %s0, %s163
      %p165 = pneg %p59
      %p166 = pneg %p56
      %p167 = pneg %p80
      %p168 = pneg %p77
      %p169 = pneg %p108
      %p170 = pneg %p105
      %p171 = scmp.lt.s32.totalorder %s18, 1
      %s172 = scalar_select %p171, %s18, 1
      %p173 = scmp.lt.s32.totalorder %s19, 1
      %s174 = scalar_select %p173, %s19, 1
      %s175 = smul.addr %s172, 2
      %s176 = sadd.s32 %s174, %s175
      %s177 = smul.addr %s176, 2
      %s178 = scalar_lea.vmem %s2, %s177
      %s179 = smul.u32 %s19, 2
      %s180 = sadd.s32 %s179, %s20
      %s181 = smul.u32 8, %s180
      %p182 = scmp.lt.s32.totalorder %s18, 1
      %s183 = scalar_select %p182, %s18, 1
      %p184 = scmp.lt.s32.totalorder %s181, 31
      %s185 = scalar_select %p184, %s181, 31
      %s186 = smul.addr %s183, 32
      %s187 = sadd.s32 %s185, %s186
      %s188 = smul.addr %s187, 4
      %s189 = scalar_lea.vmem %s0, %s188
      %s190 = smul.u32 %s19, 2
      %s191 = sadd.s32 %s190, %s20
      %s192 = smul.u32 8, %s191
      %p193 = scmp.lt.s32.totalorder %s18, 1
      %s194 = scalar_select %p193, %s18, 1
      %p195 = scmp.lt.s32.totalorder %s19, 1
      %s196 = scalar_select %p195, %s19, 1
      %s197 = smul.addr %s194, 2
      %s198 = sadd.s32 %s196, %s197
      %s199 = smul.addr %s198, 2
      %s200 = scalar_lea.vmem %s2, %s199
      %p202 = scmp.eq.s32.totalorder %s20, 0
      // Predicated region
      $region29: #{_lambda_.2} parent=27 // pred_check
        %p203 = pneg %p202
      $region30: #{_lambda_.2} parent=27 // pred_check_branch
        %205 = sbr.rel (%p203) target = $region32
      $region31: #{_lambda_.2} parent=27 // pred_region
        %206 = vst [vmem:[#allocation2] sm:$0x1] 0.0
        %207 = vst [vmem:[#allocation3] sm:$0x1] 0.0
      $region32: #{_lambda_.2} parent=27 // pred_fallthru
        _
      %v208 = vld [vmem:[%s189] sm:$0xf]
      %v209 = vld [vmem:[%s189 + $0x4] sm:$0xf]
      %v210 = vld [vmem:[%s189 + $0x8] sm:$0xf]
      %v211 = vld [vmem:[%s189 + $0xc] sm:$0xf]
      %v212 = vld [vmem:[%s189 + $0x10] sm:$0xf]
      %v213 = vld [vmem:[%s189 + $0x14] sm:$0xf]
      %v214 = vld [vmem:[%s189 + $0x18] sm:$0xf]
      %v215 = vld [vmem:[%s189 + $0x1c] sm:$0xf]
      %v216 = vld [vmem:[%s1] sm:$0xf]
      %v217 = vld [vmem:[%s1 + $0x4] sm:$0xf]
      %v218 = vld [vmem:[%s1 + $0x8] sm:$0xf]
      %v219 = vld [vmem:[%s1 + $0xc] sm:$0xf]
      %v228 = vunpack.c.l.b16 %v208
      %v229 = vunpack.c.l.b16 %v209
      %v230 = vunpack.c.l.b16 %v210
      %v231 = vunpack.c.l.b16 %v211
      %v232 = vunpack.c.l.b16 %v212
      %v233 = vunpack.c.l.b16 %v213
      %v234 = vunpack.c.l.b16 %v214
      %v235 = vunpack.c.l.b16 %v215
      %v236 = vpack.c.b16 %v229, %v228
      %v237 = vpack.c.b16 %v231, %v230
      %v238 = vpack.c.b16 %v233, %v232
      %v239 = vpack.c.b16 %v235, %v234
      %v244 = vunpack.c.l.b16 %v216
      %v245 = vunpack.c.l.b16 %v217
      %v246 = vunpack.c.l.b16 %v218
      %v247 = vunpack.c.l.b16 %v219
      %v248 = vpack.c.b16 %v245, %v244
      %v249 = vpack.c.b16 %v247, %v246
      %vm252 = vcmask 261120
      %v254 = vsel %vm252, %v236, 0
      %v257 = vsel %vm252, %v237, 0
      %v260 = vsel %vm252, %v238, 0
      %v263 = vsel %vm252, %v239, 0
      %265 = vmatprep.subr.bf16.mxu0 0
      %266 = vmatpush1.bf16.msra.mxu0 %v248
      %267 = vmatprep.subr.bf16.mxu0 0
      %268 = vmatpush1.bf16.msra.mxu0 %v249
      %269 = vmatprep.subr.bf16.mxu0 0
      %270 = vmatpush1.bf16.msra.mxu0 0
      %271 = vmatprep.subr.bf16.mxu0 0
      %272 = vmatpush1.bf16.msra.mxu0 0
      %273 = vmatprep.subr.bf16.mxu0 0
      %274 = vmatpush1.bf16.msra.mxu0 0
      %275 = vmatprep.subr.bf16.mxu0 0
      %276 = vmatpush1.bf16.msra.mxu0 0
      %277 = vmatprep.subr.bf16.mxu0 0
      %278 = vmatpush1.bf16.msra.mxu0 0
      %279 = vmatprep.subr.bf16.mxu0 0
      %280 = vmatpush1.bf16.msra.mxu0 0
      %281 = vmatprep.subr.bf16.mxu0 0
      %282 = vmatpush1.bf16.msra.mxu0 0
      %283 = vmatprep.subr.bf16.mxu0 0
      %284 = vmatpush1.bf16.msra.mxu0 0
      %285 = vmatprep.subr.bf16.mxu0 0
      %286 = vmatpush1.bf16.msra.mxu0 0
      %287 = vmatprep.subr.bf16.mxu0 0
      %288 = vmatpush1.bf16.msra.mxu0 0
      %289 = vmatprep.subr.bf16.mxu0 0
      %290 = vmatpush1.bf16.msra.mxu0 0
      %291 = vmatprep.subr.bf16.mxu0 0
      %292 = vmatpush1.bf16.msra.mxu0 0
      %293 = vmatprep.subr.bf16.mxu0 0
      %294 = vmatpush1.bf16.msra.mxu0 0
      %295 = vmatprep.subr.bf16.mxu0 0
      %296 = vmatpush1.bf16.msra.mxu0 0
      %297 = vmatprep.mubr.bf16.mxu0 0
      %298 = vmatmul.mubr.bf16.gmra.mrb[0].mxu0 %v254
      %v299 = vpop.f32.mrb[0].mxu0
      %v300 = vadd.f32 0.0, %v299
      %v301 = vpop.f32.mrb[0].mxu0
      %v302 = vpop.f32.mrb[0].mxu0
      %v303 = vadd.f32 0.0, %v302
      %v304 = vpop.f32.mrb[0].mxu0
      %305 = vmatprep.mubr.bf16.mxu0 0
      %306 = vmatmul.mubr.bf16.gmra.mrb[0].mxu0 %v257
      %v307 = vpop.f32.mrb[0].mxu0
      %v308 = vadd.f32 0.0, %v307
      %v309 = vpop.f32.mrb[0].mxu0
      %v310 = vpop.f32.mrb[0].mxu0
      %v311 = vadd.f32 0.0, %v310
      %v312 = vpop.f32.mrb[0].mxu0
      %313 = vmatprep.mubr.bf16.mxu0 0
      %314 = vmatmul.mubr.bf16.gmra.mrb[0].mxu0 %v260
      %v315 = vpop.f32.mrb[0].mxu0
      %v316 = vadd.f32 0.0, %v315
      %v317 = vpop.f32.mrb[0].mxu0
      %v318 = vpop.f32.mrb[0].mxu0
      %v319 = vadd.f32 0.0, %v318
      %v320 = vpop.f32.mrb[0].mxu0
      %321 = vmatprep.mubr.bf16.mxu0 0
      %322 = vmatmul.mubr.bf16.gmra.mrb[0].mxu0 %v263
      %v323 = vpop.f32.mrb[0].mxu0
      %v324 = vadd.f32 0.0, %v323
      %v325 = vpop.f32.mrb[0].mxu0
      %v326 = vpop.f32.mrb[0].mxu0
      %v327 = vadd.f32 0.0, %v326
      %v328 = vpop.f32.mrb[0].mxu0
      %329 = vdwg.mxu0
      %v330 = vld [vmem:[#allocation2] sm:$0x1]
      %v331 = vadd.f32 %v300, %v303
      %v332 = vadd.f32 %v331, %v308
      %v333 = vadd.f32 %v332, %v311
      %v334 = vadd.f32 %v333, %v316
      %v335 = vadd.f32 %v334, %v319
      %v336 = vadd.f32 %v335, %v324
      %v337 = vadd.f32 %v336, %v327
      %v338 = vrot.slane %v337, 4
      %v339 = vadd.f32 %v337, %v338
      %v340 = vrot.slane %v339, 2
      %v341 = vadd.f32 %v339, %v340
      %v342 = vrot.slane %v341, 1
      %v343 = vadd.f32 %v341, %v342
      %v344 = vadd.f32 %v330, %v343
      %345 = vst [vmem:[#allocation2] sm:$0x1] %v344
      %v346 = vld [vmem:[#allocation3] sm:$0x1]
      %v347 = vmul.f32 %v300, %v300
      %v348 = vmul.f32 %v303, %v303
      %v349 = vmul.f32 %v308, %v308
      %v350 = vmul.f32 %v311, %v311
      %v351 = vmul.f32 %v316, %v316
      %v352 = vmul.f32 %v319, %v319
      %v353 = vmul.f32 %v324, %v324
      %v354 = vmul.f32 %v327, %v327
      %v355 = vadd.f32 %v347, %v348
      %v356 = vadd.f32 %v355, %v349
      %v357 = vadd.f32 %v356, %v350
      %v358 = vadd.f32 %v357, %v351
      %v359 = vadd.f32 %v358, %v352
      %v360 = vadd.f32 %v359, %v353
      %v361 = vadd.f32 %v360, %v354
      %v362 = vrot.slane %v361, 4
      %v363 = vadd.f32 %v361, %v362
      %v364 = vrot.slane %v363, 2
      %v365 = vadd.f32 %v363, %v364
      %v366 = vrot.slane %v365, 1
      %v367 = vadd.f32 %v365, %v366
      %v368 = vadd.f32 %v346, %v367
      %369 = vst [vmem:[#allocation3] sm:$0x1] %v368
      %p370 = scmp.eq.s32.totalorder %s20, 1
      // Predicated region
      $region33: #{_lambda_.2} parent=27 // pred_check
        %p371 = pneg %p370
      $region34: #{_lambda_.2} parent=27 // pred_check_branch
        %373 = sbr.rel (%p371) target = $region36
      $region35: #{_lambda_.2} parent=27 // pred_region
        %v374 = vld [vmem:[#allocation2] sm:$0x1]
        %375 = vst [vmem:[%s200] sm:$0x1] %v374
        %v376 = vld [vmem:[#allocation3] sm:$0x1]
        %377 = vst [vmem:[%s200 + $0x1] sm:$0x1] %v376
      $region36: #{_lambda_.2} parent=27 // pred_fallthru
        _
      %p378 = scmp.lt.s32.totalorder %s18, 1
      %s379 = scalar_select %p378, %s18, 1
      %p380 = scmp.lt.s32.totalorder %s19, 1
      %s381 = scalar_select %p380, %s19, 1
      %s382 = smul.addr %s379, 2
      %s383 = sadd.s32 %s381, %s382
      %s384 = smul.addr %s383, 2
      %s385 = scalar_lea.vmem %s2, %s384
      // Predicated region
      $region37: #{_lambda_.2} parent=27 // pred_check
        %p386 = pneg %p105
      $region38: #{_lambda_.2} parent=27 // pred_check_branch
        %388 = sbr.rel (%p386) target = $region40
      $region39: #{_lambda_.2} parent=27 // pred_region
        _
      $region40: #{_lambda_.2} parent=27 // pred_fallthru
        _
    $region28: #{_lambda_.2} parent=5 // pred_fallthru
      _
    %p389 = scmp.le.s32.totalorder 2, %s8
    // Predicated region
    $region41: #{_lambda_.2} parent=5 // pred_check
      %p390 = pneg %p389
    $region42: #{_lambda_.2} parent=5 // pred_check_branch
      %392 = sbr.rel (%p390) target = $region44
    $region43: #{_lambda_.2} parent=5 // pred_region
      %s393 = ssub.s32 %s8, 2
      // Predicated region
      $region45: #{_lambda_.2} parent=43 // pred_check
        %p394 = pneg %p111
      $region46: #{_lambda_.2} parent=43 // pred_check_branch
        %396 = sbr.rel (%p394) target = $region48
      $region47: #{_lambda_.2} parent=43 // pred_region
        %p397 = scmp.lt.s32.totalorder %s21, 1
        %s398 = scalar_select %p397, %s21, 1
        %p399 = scmp.lt.s32.totalorder %s22, 1
        %s400 = scalar_select %p399, %s22, 1
        %s401 = smul.addr %s398, 2
        %s402 = sadd.s32 %s400, %s401
        %s403 = smul.addr %s402, 2
        %s404 = scalar_lea.vmem %s2, %s403
      $region48: #{_lambda_.2} parent=43 // pred_fallthru
        _
    $region44: #{_lambda_.2} parent=5 // pred_fallthru
      _
  $region6: #{_lambda_.2} parent=0 // loop_footer
    %s12 = sadd.s32 1, %s8
  $region7: #{_lambda_.2} parent=0 // loop_footer_branch
    %7 = sbr.rel target = $region3
  $region8: #{_lambda_.2} parent=0 // loop_exit
    _

// kernel: _lambda_.3
$region0: #{_lambda_.3}
  #allocation0 [shape = 'u32[]', space=smem, size = 0x4, offset = 0x4, fixed_abs, tag = 'smem constant byte address 0x4 - core index']
  #allocation1 [shape = 'u32[144,128]{1,0:T(1,128)}', space=vmem, size = 0x12000, scoped, tag = 'internal scratch']
  %s0 = inlined_call_operand.vmem [shape: bf16[2,256,32], index: 0, kind: input, shape index: {}]
  %s1 = inlined_call_operand.vmem [shape: bf16[32,128], index: 1, kind: input, shape index: {}]
  %s2 = inlined_call_operand.vmem [shape: f32[2,2,128], index: 2, kind: input, shape index: {}]
  %s3 = inlined_call_operand.vmem [shape: bf16[2,256,128], index: 3, kind: output, shape index: {}]
  %s4 = sld [smem:[#allocation0]]
  $region45: #{_lambda_.3} parent=0
    _
  %s6 = ssub.s32 1, %s4
  %s7 = scalar_select 0, %s6, %s4
  loop: start=0, step=1, limit=10
  $region2: #{_lambda_.3} parent=0 // loop_pre_header
    _
  $region3: #{_lambda_.3} parent=0 // loop_header
    %s9 = sphi 0, %s13
    %p10 = scmp.ge.s32.totalorder %s9, 10
    %s16 = sphi 0, %s28
    %s17 = sphi 0, %s24
    %s18 = sphi 0, %s16
    %s19 = sphi 0, %s17
    %s20 = sphi 0, %s18
    %s21 = sphi 0, %s19
    %s33 = sphi 0, %s35
    %s36 = sphi 0, %s33
    %s37 = sphi 0, %s36
    %s53 = sphi 0, %s37
    %s57 = sphi 0, %s57
    %s59 = sphi 0, %s57
    %s60 = sphi 0, %s59
    %s74 = sphi 0, %s60
    %s80 = sphi 0, %s82
    %s83 = sphi 0, %s80
    %s84 = sphi 0, %s83
    %s100 = sphi 0, %s84
    %s108 = sphi 0, %s110
    %s111 = sphi 0, %s108
    %s112 = sphi 0, %s111
    %s128 = sphi 0, %s112
  $region4: #{_lambda_.3} parent=0 // loop_header_branch
    %12 = sbr.rel (%p10) target = $region8
  $region5: #{_lambda_.3} parent=0 // loop_body
    %s14 = ssub.s32 %s9, 1
    %s15 = ssub.s32 %s9, 2
    %s22 = sadd.s32 1, %s17
    %p23 = scmp.ge.s32.totalorder %s22, 4
    %s24 = scalar_select %p23, 0, %s22
    %s25 = sadd.s32 1, %s16
    %s26 = scalar_select %p23, %s25, %s16
    %p27 = scmp.ge.s32.totalorder %s26, 2
    %s28 = scalar_select %p27, 0, %s26
    %s29 = ssub.s32 %s16, %s28
    %s30 = ssub.s32 %s17, %s24
    %s31 = sor.u32 %s29, %s30
    %p32 = scmp.eq.s32.totalorder %s31, 0
    %s34 = sadd.s32 %s33, 1
    %s35 = scalar_select %p32, %s33, %s34
    %p38 = pneg %p32
    %p39 = scmp.eq.s32.totalorder %s9, 7
    %p40 = por %p38, %p39
    %p41 = scmp.ne.s32.totalorder %s33, %s36
    %p42 = scmp.eq.s32.totalorder %s9, 0
    %p43 = por %p41, %p42
    %p44 = scmp.ne.s32.totalorder %s33, %s36
    %p45 = scmp.eq.s32.totalorder %s14, 7
    %p46 = por %p44, %p45
    %p47 = scmp.ne.s32.totalorder %s36, %s37
    %p48 = scmp.eq.s32.totalorder %s14, 0
    %p49 = por %p47, %p48
    %p50 = scmp.ne.s32.totalorder %s36, %s37
    %p51 = scmp.eq.s32.totalorder %s15, 7
    %p52 = por %p50, %p51
    %p54 = scmp.ne.s32.totalorder %s37, %s53
    %p55 = scmp.eq.s32.totalorder %s15, 0
    %p56 = por %p54, %p55
    %s58 = sadd.s32 %s57, 1
    %p61 = scmp.eq.s32.totalorder %s9, 7
    %p62 = scmp.ne.s32.totalorder %s57, %s59
    %p63 = scmp.eq.s32.totalorder %s9, 0
    %p64 = por %p62, %p63
    %p65 = scmp.ne.s32.totalorder %s57, %s59
    %p66 = scmp.eq.s32.totalorder %s14, 7
    %p67 = por %p65, %p66
    %p68 = scmp.ne.s32.totalorder %s59, %s60
    %p69 = scmp.eq.s32.totalorder %s14, 0
    %p70 = por %p68, %p69
    %p71 = scmp.ne.s32.totalorder %s59, %s60
    %p72 = scmp.eq.s32.totalorder %s15, 7
    %p73 = por %p71, %p72
    %p75 = scmp.ne.s32.totalorder %s60, %s74
    %p76 = scmp.eq.s32.totalorder %s15, 0
    %p77 = por %p75, %p76
    %s78 = ssub.s32 %s16, %s28
    %p79 = scmp.eq.s32.totalorder %s78, 0
    %s81 = sadd.s32 %s80, 1
    %s82 = scalar_select %p79, %s80, %s81
    %p85 = pneg %p79
    %p86 = scmp.eq.s32.totalorder %s9, 7
    %p87 = por %p85, %p86
    %p88 = scmp.ne.s32.totalorder %s80, %s83
    %p89 = scmp.eq.s32.totalorder %s9, 0
    %p90 = por %p88, %p89
    %p91 = scmp.ne.s32.totalorder %s80, %s83
    %p92 = scmp.eq.s32.totalorder %s14, 7
    %p93 = por %p91, %p92
    %p94 = scmp.ne.s32.totalorder %s83, %s84
    %p95 = scmp.eq.s32.totalorder %s14, 0
    %p96 = por %p94, %p95
    %p97 = scmp.ne.s32.totalorder %s83, %s84
    %p98 = scmp.eq.s32.totalorder %s15, 7
    %p99 = por %p97, %p98
    %p101 = scmp.ne.s32.totalorder %s84, %s100
    %p102 = scmp.eq.s32.totalorder %s15, 0
    %p103 = por %p101, %p102
    %s104 = ssub.s32 %s16, %s28
    %s105 = ssub.s32 %s17, %s24
    %s106 = sor.u32 %s104, %s105
    %p107 = scmp.eq.s32.totalorder %s106, 0
    %s109 = sadd.s32 %s108, 1
    %s110 = scalar_select %p107, %s108, %s109
    %p113 = pneg %p107
    %p114 = scmp.eq.s32.totalorder %s9, 7
    %p115 = por %p113, %p114
    %p116 = scmp.ne.s32.totalorder %s108, %s111
    %p117 = scmp.eq.s32.totalorder %s9, 0
    %p118 = por %p116, %p117
    %p119 = scmp.ne.s32.totalorder %s108, %s111
    %p120 = scmp.eq.s32.totalorder %s14, 7
    %p121 = por %p119, %p120
    %p122 = scmp.ne.s32.totalorder %s111, %s112
    %p123 = scmp.eq.s32.totalorder %s14, 0
    %p124 = por %p122, %p123
    %p125 = scmp.ne.s32.totalorder %s111, %s112
    %p126 = scmp.eq.s32.totalorder %s15, 7
    %p127 = por %p125, %p126
    %p129 = scmp.ne.s32.totalorder %s112, %s128
    %p130 = scmp.eq.s32.totalorder %s15, 0
    %p131 = por %p129, %p130
    %p132 = scmp.le.s32.totalorder 1, %s9
    %p133 = scmp.lt.s32.totalorder %s9, 9
    %p134 = pnand %p132, %p133
    %p135 = pneg %p134
    // Predicated region
    $region9: #{_lambda_.3} parent=5 // pred_check
      _
    $region10: #{_lambda_.3} parent=5 // pred_check_branch
      %137 = sbr.rel (%p134) target = $region12
    $region11: #{_lambda_.3} parent=5 // pred_region
      %s138 = ssub.s32 %s9, 1
      // Predicated region
      $region13: #{_lambda_.3} parent=11 // pred_check
        %p139 = pneg %p70
      $region14: #{_lambda_.3} parent=11 // pred_check_branch
        %141 = sbr.rel (%p139) target = $region16
      $region15: #{_lambda_.3} parent=11 // pred_region
        _
      $region16: #{_lambda_.3} parent=11 // pred_fallthru
        _
    $region12: #{_lambda_.3} parent=5 // pred_fallthru
      _
    %p142 = scmp.lt.s32.totalorder %s9, 8
    // Predicated region
    $region17: #{_lambda_.3} parent=5 // pred_check
      %p143 = pneg %p142
    $region18: #{_lambda_.3} parent=5 // pred_check_branch
      %145 = sbr.rel (%p143) target = $region20
    $region19: #{_lambda_.3} parent=5 // pred_region
      // Predicated region
      $region21: #{_lambda_.3} parent=19 // pred_check
        %p146 = pneg %p43
      $region22: #{_lambda_.3} parent=19 // pred_check_branch
        %148 = sbr.rel (%p146) target = $region24
      $region23: #{_lambda_.3} parent=19 // pred_region
        %s149 = smul.u32 8, %s17
        %p150 = scmp.lt.s32.totalorder %s16, 1
        %s151 = scalar_select %p150, %s16, 1
        %p152 = scmp.lt.s32.totalorder %s149, 31
        %s153 = scalar_select %p152, %s149, 31
        %s154 = smul.addr %s151, 32
        %s155 = sadd.s32 %s153, %s154
        %s156 = smul.addr %s155, 4
        %s157 = scalar_lea.vmem %s0, %s156
        %s158 = smul.u32 8, %s17
      $region24: #{_lambda_.3} parent=19 // pred_fallthru
        _
      // Predicated region
      $region25: #{_lambda_.3} parent=19 // pred_check
        %p159 = pneg %p90
      $region26: #{_lambda_.3} parent=19 // pred_check_branch
        %161 = sbr.rel (%p159) target = $region28
      $region27: #{_lambda_.3} parent=19 // pred_region
        %p162 = scmp.lt.s32.totalorder %s16, 1
        %s163 = scalar_select %p162, %s16, 1
        %s164 = smul.addr %s163, 2
        %s165 = scalar_lea.vmem %s2, %s164
      $region28: #{_lambda_.3} parent=19 // pred_fallthru
        _
    $region20: #{_lambda_.3} parent=5 // pred_fallthru
      _
    %p166 = scmp.le.s32.totalorder 1, %s9
    %p167 = scmp.lt.s32.totalorder %s9, 9
    %p168 = pnand %p166, %p167
    %p169 = pneg %p168
    // Predicated region
    $region29: #{_lambda_.3} parent=5 // pred_check
      _
    $region30: #{_lambda_.3} parent=5 // pred_check_branch
      %171 = sbr.rel (%p168) target = $region32
    $region31: #{_lambda_.3} parent=5 // pred_region
      %s172 = ssub.s32 %s9, 1
      %s173 = smul.u32 8, %s19
      %p174 = scmp.lt.s32.totalorder %s18, 1
      %s175 = scalar_select %p174, %s18, 1
      %p176 = scmp.lt.s32.totalorder %s173, 31
      %s177 = scalar_select %p176, %s173, 31
      %s178 = smul.addr %s175, 32
      %s179 = sadd.s32 %s177, %s178
      %s180 = smul.addr %s179, 4
      %s181 = scalar_lea.vmem %s0, %s180
      %p182 = pneg %p49
      %p183 = pneg %p46
      %p184 = pneg %p70
      %p185 = pneg %p67
      %p186 = scmp.lt.s32.totalorder %s18, 1
      %s187 = scalar_select %p186, %s18, 1
      %s188 = smul.addr %s187, 2
      %s189 = scalar_lea.vmem %s2, %s188
      %p190 = pneg %p96
      %p191 = pneg %p93
      %p192 = pneg %p124
      %p193 = pneg %p121
      %s194 = smul.u32 8, %s19
      %p195 = scmp.lt.s32.totalorder %s18, 1
      %s196 = scalar_select %p195, %s18, 1
      %p197 = scmp.lt.s32.totalorder %s194, 31
      %s198 = scalar_select %p197, %s194, 31
      %s199 = smul.addr %s196, 32
      %s200 = sadd.s32 %s198, %s199
      %s201 = smul.addr %s200, 4
      %s202 = scalar_lea.vmem %s3, %s201
      %s203 = smul.u32 8, %s19
      %p204 = scmp.lt.s32.totalorder %s18, 1
      %s205 = scalar_select %p204, %s18, 1
      %p206 = scmp.lt.s32.totalorder %s203, 31
      %s207 = scalar_select %p206, %s203, 31
      %s208 = smul.addr %s205, 32
      %s209 = sadd.s32 %s207, %s208
      %s210 = smul.addr %s209, 4
      %s211 = scalar_lea.vmem %s0, %s210
      %s212 = smul.u32 8, %s19
      %p213 = scmp.lt.s32.totalorder %s18, 1
      %s214 = scalar_select %p213, %s18, 1
      %s215 = smul.addr %s214, 2
      %s216 = scalar_lea.vmem %s2, %s215
      %s217 = smul.u32 8, %s19
      %p218 = scmp.lt.s32.totalorder %s18, 1
      %s219 = scalar_select %p218, %s18, 1
      %p220 = scmp.lt.s32.totalorder %s217, 31
      %s221 = scalar_select %p220, %s217, 31
      %s222 = smul.addr %s219, 32
      %s223 = sadd.s32 %s221, %s222
      %s224 = smul.addr %s223, 4
      %s225 = scalar_lea.vmem %s3, %s224
      %s226 = smul.u32 8, %s19
      %v228 = vld [vmem:[%s211] sm:$0xf]
      %v229 = vld [vmem:[%s211 + $0x4] sm:$0xf]
      %v230 = vld [vmem:[%s211 + $0x8] sm:$0xf]
      %v231 = vld [vmem:[%s211 + $0xc] sm:$0xf]
      %v232 = vld [vmem:[%s211 + $0x10] sm:$0xf]
      %v233 = vld [vmem:[%s211 + $0x14] sm:$0xf]
      %v234 = vld [vmem:[%s211 + $0x18] sm:$0xf]
      %v235 = vld [vmem:[%s211 + $0x1c] sm:$0xf]
      %v236 = vld [vmem:[%s1] sm:$0xf]
      %v237 = vld [vmem:[%s1 + $0x4] sm:$0xf]
      %v238 = vld [vmem:[%s1 + $0x8] sm:$0xf]
      %v239 = vld [vmem:[%s1 + $0xc] sm:$0xf]
      %v248 = vunpack.c.l.b16 %v228
      %v249 = vunpack.c.l.b16 %v229
      %v250 = vunpack.c.l.b16 %v230
      %v251 = vunpack.c.l.b16 %v231
      %v252 = vunpack.c.l.b16 %v232
      %v253 = vunpack.c.l.b16 %v233
      %v254 = vunpack.c.l.b16 %v234
      %v255 = vunpack.c.l.b16 %v235
      %v256 = vpack.c.b16 %v249, %v248
      %v257 = vpack.c.b16 %v251, %v250
      %v258 = vpack.c.b16 %v253, %v252
      %v259 = vpack.c.b16 %v255, %v254
      %v264 = vunpack.c.l.b16 %v236
      %v265 = vunpack.c.l.b16 %v237
      %v266 = vunpack.c.l.b16 %v238
      %v267 = vunpack.c.l.b16 %v239
      %v268 = vpack.c.b16 %v265, %v264
      %v269 = vpack.c.b16 %v267, %v266
      %vm272 = vcmask 261120
      %v274 = vsel %vm272, %v256, 0
      %v277 = vsel %vm272, %v257, 0
      %v280 = vsel %vm272, %v258, 0
      %v283 = vsel %vm272, %v259, 0
      %285 = vmatprep.subr.bf16.mxu0 0
      %286 = vmatpush1.bf16.msra.mxu0 %v268
      %287 = vmatprep.subr.bf16.mxu0 0
      %288 = vmatpush1.bf16.msra.mxu0 %v269
      %289 = vmatprep.subr.bf16.mxu0 0
      %290 = vmatpush1.bf16.msra.mxu0 0
      %291 = vmatprep.subr.bf16.mxu0 0
      %292 = vmatpush1.bf16.msra.mxu0 0
      %293 = vmatprep.subr.bf16.mxu0 0
      %294 = vmatpush1.bf16.msra.mxu0 0
      %295 = vmatprep.subr.bf16.mxu0 0
      %296 = vmatpush1.bf16.msra.mxu0 0
      %297 = vmatprep.subr.bf16.mxu0 0
      %298 = vmatpush1.bf16.msra.mxu0 0
      %299 = vmatprep.subr.bf16.mxu0 0
      %300 = vmatpush1.bf16.msra.mxu0 0
      %301 = vmatprep.subr.bf16.mxu0 0
      %302 = vmatpush1.bf16.msra.mxu0 0
      %303 = vmatprep.subr.bf16.mxu0 0
      %304 = vmatpush1.bf16.msra.mxu0 0
      %305 = vmatprep.subr.bf16.mxu0 0
      %306 = vmatpush1.bf16.msra.mxu0 0
      %307 = vmatprep.subr.bf16.mxu0 0
      %308 = vmatpush1.bf16.msra.mxu0 0
      %309 = vmatprep.subr.bf16.mxu0 0
      %310 = vmatpush1.bf16.msra.mxu0 0
      %311 = vmatprep.subr.bf16.mxu0 0
      %312 = vmatpush1.bf16.msra.mxu0 0
      %313 = vmatprep.subr.bf16.mxu0 0
      %314 = vmatpush1.bf16.msra.mxu0 0
      %315 = vmatprep.subr.bf16.mxu0 0
      %316 = vmatpush1.bf16.msra.mxu0 0
      %317 = vmatprep.mubr.bf16.mxu0 0
      %318 = vmatmul.mubr.bf16.gmra.mrb[0].mxu0 %v274
      %v319 = vpop.f32.mrb[0].mxu0
      %v320 = vadd.f32 0.0, %v319
      %v321 = vpop.f32.mrb[0].mxu0
      %v322 = vpop.f32.mrb[0].mxu0
      %v323 = vadd.f32 0.0, %v322
      %v324 = vpop.f32.mrb[0].mxu0
      %325 = vmatprep.mubr.bf16.mxu0 0
      %326 = vmatmul.mubr.bf16.gmra.mrb[0].mxu0 %v277
      %v327 = vpop.f32.mrb[0].mxu0
      %v328 = vadd.f32 0.0, %v327
      %v329 = vpop.f32.mrb[0].mxu0
      %v330 = vpop.f32.mrb[0].mxu0
      %v331 = vadd.f32 0.0, %v330
      %v332 = vpop.f32.mrb[0].mxu0
      %333 = vmatprep.mubr.bf16.mxu0 0
      %334 = vmatmul.mubr.bf16.gmra.mrb[0].mxu0 %v280
      %v335 = vpop.f32.mrb[0].mxu0
      %v336 = vadd.f32 0.0, %v335
      %v337 = vpop.f32.mrb[0].mxu0
      %v338 = vpop.f32.mrb[0].mxu0
      %v339 = vadd.f32 0.0, %v338
      %v340 = vpop.f32.mrb[0].mxu0
      %341 = vmatprep.mubr.bf16.mxu0 0
      %342 = vmatmul.mubr.bf16.gmra.mrb[0].mxu0 %v283
      %v343 = vpop.f32.mrb[0].mxu0
      %v344 = vadd.f32 0.0, %v343
      %v345 = vpop.f32.mrb[0].mxu0
      %v346 = vpop.f32.mrb[0].mxu0
      %v347 = vadd.f32 0.0, %v346
      %v348 = vpop.f32.mrb[0].mxu0
      %349 = vdwg.mxu0
      %v350 = vld [vmem:[%s216] sm:$0x1]
      %v351 = vld [vmem:[%s216 + $0x1] sm:$0x1]
      %v352 = vlaneseq
      %v353 = vshrl.u32 %v352, 7
      %v354 = vsub.s32 0, %v353
      %v355 = vrot.slane %v350, %v354
      %v356 = vsub.f32 %v320, %v355
      %v357 = vsub.f32 %v323, %v355
      %v358 = vsub.f32 %v328, %v355
      %v359 = vsub.f32 %v331, %v355
      %v360 = vsub.f32 %v336, %v355
      %v361 = vsub.f32 %v339, %v355
      %v362 = vsub.f32 %v344, %v355
      %v363 = vsub.f32 %v347, %v355
      %v364 = vlaneseq
      %v365 = vshrl.u32 %v364, 7
      %v366 = vsub.s32 0, %v365
      %v367 = vrot.slane %v351, %v366
      %v368 = vmul.f32 %v356, %v367
      %v369 = vmul.f32 %v357, %v367
      %v370 = vmul.f32 %v358, %v367
      %v371 = vmul.f32 %v359, %v367
      %v372 = vmul.f32 %v360, %v367
      %v373 = vmul.f32 %v361, %v367
      %v374 = vmul.f32 %v362, %v367
      %v375 = vmul.f32 %v363, %v367
      %v376 = vmul.f32 %v368, 0.2
      %v377 = vmul.f32 %v369, 0.2
      %v378 = vmul.f32 %v370, 0.2
      %v379 = vmul.f32 %v371, 0.2
      %v380 = vmul.f32 %v372, 0.2
      %v381 = vmul.f32 %v373, 0.2
      %v382 = vmul.f32 %v374, 0.2
      %v383 = vmul.f32 %v375, 0.2
      %v384 = vmax.f32 %v368, %v376
      %v385 = vmax.f32 %v369, %v377
      %v386 = vmax.f32 %v370, %v378
      %v387 = vmax.f32 %v371, %v379
      %v388 = vmax.f32 %v372, %v380
      %v389 = vmax.f32 %v373, %v381
      %v390 = vmax.f32 %v374, %v382
      %v391 = vmax.f32 %v375, %v383
      %v392 = vpack.c.bf16 %v385, %v384
      %v393 = vpack.c.bf16 %v387, %v386
      %v394 = vpack.c.bf16 %v389, %v388
      %v395 = vpack.c.bf16 %v391, %v390
      %v400 = vunpack.c.l.b16 %v392
      %v401 = vunpack.c.h.b16 %v392
      %v402 = vunpack.c.l.b16 %v393
      %v403 = vunpack.c.h.b16 %v393
      %v404 = vunpack.c.l.b16 %v394
      %v405 = vunpack.c.h.b16 %v394
      %v406 = vunpack.c.l.b16 %v395
      %v407 = vunpack.c.h.b16 %v395
      %v408 = vpack.c.b16 %v400, %v400
      %v409 = vpack.c.b16 %v401, %v401
      %v410 = vpack.c.b16 %v402, %v402
      %v411 = vpack.c.b16 %v403, %v403
      %v412 = vpack.c.b16 %v404, %v404
      %v413 = vpack.c.b16 %v405, %v405
      %v414 = vpack.c.b16 %v406, %v406
      %v415 = vpack.c.b16 %v407, %v407
      %424 = vst [vmem:[%s225] sm:$0xf] %v408
      %425 = vst [vmem:[%s225 + $0x4] sm:$0xf] %v409
      %426 = vst [vmem:[%s225 + $0x8] sm:$0xf] %v410
      %427 = vst [vmem:[%s225 + $0xc] sm:$0xf] %v411
      %428 = vst [vmem:[%s225 + $0x10] sm:$0xf] %v412
      %429 = vst [vmem:[%s225 + $0x14] sm:$0xf] %v413
      %430 = vst [vmem:[%s225 + $0x18] sm:$0xf] %v414
      %431 = vst [vmem:[%s225 + $0x1c] sm:$0xf] %v415
      %s432 = smul.u32 8, %s19
      %p433 = scmp.lt.s32.totalorder %s18, 1
      %s434 = scalar_select %p433, %s18, 1
      %p435 = scmp.lt.s32.totalorder %s432, 31
      %s436 = scalar_select %p435, %s432, 31
      %s437 = smul.addr %s434, 32
      %s438 = sadd.s32 %s436, %s437
      %s439 = smul.addr %s438, 4
      %s440 = scalar_lea.vmem %s3, %s439
      // Predicated region
      $region33: #{_lambda_.3} parent=31 // pred_check
        %p441 = pneg %p121
      $region34: #{_lambda_.3} parent=31 // pred_check_branch
        %443 = sbr.rel (%p441) target = $region36
      $region35: #{_lambda_.3} parent=31 // pred_region
        %s444 = smul.u32 8, %s19
      $region36: #{_lambda_.3} parent=31 // pred_fallthru
        _
    $region32: #{_lambda_.3} parent=5 // pred_fallthru
      _
    %p445 = scmp.le.s32.totalorder 2, %s9
    // Predicated region
    $region37: #{_lambda_.3} parent=5 // pred_check
      %p446 = pneg %p445
    $region38: #{_lambda_.3} parent=5 // pred_check_branch
      %448 = sbr.rel (%p446) target = $region40
    $region39: #{_lambda_.3} parent=5 // pred_region
      %s449 = ssub.s32 %s9, 2
      // Predicated region
      $region41: #{_lambda_.3} parent=39 // pred_check
        %p450 = pneg %p127
      $region42: #{_lambda_.3} parent=39 // pred_check_branch
        %452 = sbr.rel (%p450) target = $region44
      $region43: #{_lambda_.3} parent=39 // pred_region
        %s453 = smul.u32 8, %s21
        %p454 = scmp.lt.s32.totalorder %s20, 1
        %s455 = scalar_select %p454, %s20, 1
        %p456 = scmp.lt.s32.totalorder %s453, 31
        %s457 = scalar_select %p456, %s453, 31
        %s458 = smul.addr %s455, 32
        %s459 = sadd.s32 %s457, %s458
        %s460 = smul.addr %s459, 4
        %s461 = scalar_lea.vmem %s3, %s460
      $region44: #{_lambda_.3} parent=39 // pred_fallthru
        _
    $region40: #{_lambda_.3} parent=5 // pred_fallthru
      _
  $region6: #{_lambda_.3} parent=0 // loop_footer
    %s13 = sadd.s32 1, %s9
  $region7: #{_lambda_.3} parent=0 // loop_footer_branch
    %8 = sbr.rel target = $region3
  $region8: #{_lambda_.3} parent=0 // loop_exit
    _

</llo_original>
